<compile_context>
chip_gen: v6e
topology: v6e:2x2x1
jax: 0.10.0
libtpu: 0.0.40
codegen_flags: <defaults>
</compile_context>

<pallas_src>
import functools

import jax
import jax.numpy as jnp
from jax.experimental import pallas as pl
from jax.experimental.pallas import tpu as pltpu


def _graph_agg_kernel(ctx_ref, tgt_ref, adj_ref, maskt_ref, lmat_ref, wbd_ref,
                      bias_ref, out_ref, *, order: int, exact_recip: bool):
    """One grid step = one (batch, time-tile) slab; all math is time-last (lane axis).

    ctx_ref  : (1, num_n, d, T)                    context features
    tgt_ref  : (1, num_m, d, T)                    target features
    adj_ref  : (1, order, num_m, num_n)            adjacency (for denominators)
    maskt_ref: (1, num_n, T)                       missing mask, time-last
    lmat_ref : (1, order, num_m*c_out, num_n*d)    kron(adj_i, W_hop_i) per hop
    wbd_ref  : (num_m*c_out, num_m*d)              block-diag of summed weight slabs
    bias_ref : (c_out, 1)                          f32 bias column
    out_ref  : (1, num_m, c_out, T)
    """
    num_n, d, T = ctx_ref.shape[1], ctx_ref.shape[2], ctx_ref.shape[3]
    num_m = tgt_ref.shape[1]
    c_out = out_ref.shape[2]

    keep = 1.0 - maskt_ref[0]                                   # [num_n, T] (1 = present)

    # Masked context / target flattened channel-major (layout-preserving: d % 8 == 0,
    # T stays on the lane axis).
    kctx = (ctx_ref[0] * keep[:, None, :]).reshape(num_n * d, T)
    tgt_flat = tgt_ref[0].reshape(num_m * d, T)

    # Target-feature conv term (weight slabs pre-summed, block-diagonal over m) + bias.
    y = jnp.dot(wbd_ref[...], tgt_flat, preferred_element_type=jnp.float32)
    y = y.reshape(num_m, c_out, T) + bias_ref[...][None, :, :]

    # Per hop: y += rinv_i * (kron(adj_i, W_i) @ kctx).  Static unroll (order is small);
    # no order-wide f32 intermediate is kept live.
    for i in range(order):
        adj_i = adj_ref[0, i]                                   # [num_m, num_n]
        den = jnp.dot(adj_i, keep, preferred_element_type=jnp.float32) + 1.0
        if exact_recip:
            rinv = 1.0 / den
        else:
            rinv = pl.reciprocal(den, approx=True)              # EUP slot (otherwise idle)
        h_i = jnp.dot(lmat_ref[0, i], kctx, preferred_element_type=jnp.float32)
        y = y + h_i.reshape(num_m, c_out, T) * rinv.reshape(num_m, 1, T)

    out_ref[0] = jnp.maximum(y, 0.0).astype(out_ref.dtype)      # relu


def graph_aggregation_pallas(feat_context, feat_target, adj, missing_mask_context,
                             weight, bias, *, order: int,
                             matmul_dtype=jnp.bfloat16,
                             vmem_budget_bytes: int = 48 * 1024 * 1024):
    """
    feat_context: [b, num_n, d, t]   feat_target: [b, num_m, d, t]
    adj:          [b, order, num_m, num_n]
    missing_mask_context: [b, t, num_n]
    weight: [c_out, (order+1)*d]   bias: [c_out]
    returns: [b, num_m, c_out, t]   (same as the PyTorch module, eval mode)
    """
    b, num_n, d, t = feat_context.shape
    num_m = feat_target.shape[1]
    c_out = weight.shape[0]
    assert weight.shape[1] == (order + 1) * d
    assert adj.shape == (b, order, num_m, num_n)
    assert missing_mask_context.shape == (b, t, num_n)
    # Layout-preserving in-kernel reshapes need these (otherwise Mosaic relayouts
    # every grid step).  For bf16, d % 16 is ideal; d % 8 already avoids the worst.
    assert d % 8 == 0, "d (per-node channels) must be a multiple of 8"
    assert c_out % 8 == 0, "c_out must be a multiple of 8"

    mm_dt = jnp.dtype(matmul_dtype)
    out_dtype = feat_target.dtype
    exact_recip = (mm_dt == jnp.dtype(jnp.float32))
    mm_bytes = mm_dt.itemsize
    out_bytes = jnp.dtype(out_dtype).itemsize
    R = num_m * c_out
    K = num_n * d  # NOTE: keeping K >= 128 (pad context nodes) fills the MXU depth on v5e.

    # ---- VMEM-budget-driven time tile ------------------------------------------------
    def footprint(tile_t: int) -> int:
        stream = 2 * (num_n * d * tile_t * mm_bytes            # ctx (double-buffered)
                      + num_m * d * tile_t * mm_bytes          # tgt
                      + num_n * tile_t * mm_bytes              # mask
                      + R * tile_t * out_bytes)                # out
        const = (order * R * K * mm_bytes                      # lmat  (Buffered(1))
                 + R * num_m * d * mm_bytes                    # wbd   (Buffered(1))
                 + order * num_m * num_n * mm_bytes            # adj   (Buffered(1))
                 + c_out * 4)                                  # bias
        inter = ((num_n + num_m) * d * tile_t * mm_bytes       # kctx + tgt_flat
                 + 2 * R * tile_t * 4                          # y acc + per-hop dot
                 + 2 * num_m * tile_t * 4)                     # den / rinv
        return stream + const + inter

    def pick_tile_t() -> int:
        if footprint(t) <= vmem_budget_bytes:
            return t                                           # whole axis in one block
        cand = (t // 128) * 128
        while cand >= 128:
            if footprint(cand) <= vmem_budget_bytes:
                return cand
            cand -= 128
        raise ValueError(
            "GraphAggregation Pallas kernel: grid-invariant blocks (kron-folded lmat / "
            f"wbd) exceed the VMEM budget ({vmem_budget_bytes} bytes). "
            "TODO(synk): chunk the hop / target-node dimension into a grid axis.")

    tile_t = pick_tile_t()
    n_t = pl.cdiv(t, tile_t)                                   # edge-padded if non-dividing
    vmem_limit = int(min(max(footprint(tile_t) * 3 // 2, 32 * 1024 * 1024),
                         64 * 1024 * 1024))                    # never ask past v7x physical

    # ---- operand preparation (time-last layout kept for the big tensors) --------------
    ctx = feat_context.astype(matmul_dtype)
    tgt = feat_target.astype(matmul_dtype)
    mask_t = jnp.swapaxes(missing_mask_context, 1, 2).astype(matmul_dtype)   # [b, num_n, t]
    adj_c = adj.astype(matmul_dtype)                                         # [b, order, m, n]

    # Weight slabs: slab 0 -> target features, slab i+1 -> hop-i aggregation.
    w = weight.astype(jnp.float32).reshape(c_out, order + 1, d)
    w_all = jnp.sum(w, axis=1)                         # target appears in every agg term
    w_hops = jnp.transpose(w[:, 1:, :], (1, 0, 2))     # [order, c_out, d]

    # kron(adj_i, W_hop_i) per batch / hop; rows (m, c_out), cols (n, d).
    lmat = jnp.einsum('bhmn,hod->bhmond', adj.astype(jnp.float32), w_hops)
    lmat = lmat.reshape(b, order, R, K).astype(matmul_dtype)

    # Block-diagonal (over target nodes) of the summed slab; rows (m, c_out), cols (m, d).
    wbd = jnp.kron(jnp.eye(num_m, dtype=jnp.float32), w_all).astype(matmul_dtype)

    bias_col = bias.reshape(c_out, 1).astype(jnp.float32)

    # ---- cost estimate (advisory, helps XLA schedule around the kernel) ---------------
    flops = 2 * b * t * (order * R * K + R * num_m * d + order * num_m * num_n)
    bytes_accessed = int((ctx.size + tgt.size + mask_t.size + adj_c.size
                          + lmat.size + wbd.size) * mm_bytes
                         + bias_col.size * 4 + b * R * t * out_bytes)
    transcendentals = 0 if exact_recip else b * t * order * num_m
    cost = pl.CostEstimate(flops=int(flops), transcendentals=int(transcendentals),
                           bytes_accessed=bytes_accessed)

    kernel = functools.partial(_graph_agg_kernel, order=order, exact_recip=exact_recip)

    out = pl.pallas_call(
        kernel,
        out_shape=jax.ShapeDtypeStruct((b, num_m, c_out, t), out_dtype),
        grid_spec=pltpu.PrefetchScalarGridSpec(
            num_scalar_prefetch=0,
            grid=(b, n_t),
            in_specs=[
                pl.BlockSpec((1, num_n, d, tile_t), lambda bi, ti: (bi, 0, 0, ti)),
                pl.BlockSpec((1, num_m, d, tile_t), lambda bi, ti: (bi, 0, 0, ti)),
                pl.BlockSpec((1, order, num_m, num_n), lambda bi, ti: (bi, 0, 0, 0),
                             pipeline_mode=pl.Buffered(1)),
                pl.BlockSpec((1, num_n, tile_t), lambda bi, ti: (bi, 0, ti)),
                pl.BlockSpec((1, order, R, K), lambda bi, ti: (bi, 0, 0, 0),
                             pipeline_mode=pl.Buffered(1)),
                pl.BlockSpec((R, num_m * d), lambda bi, ti: (0, 0),
                             pipeline_mode=pl.Buffered(1)),
                pl.BlockSpec((c_out, 1), lambda bi, ti: (0, 0),
                             pipeline_mode=pl.Buffered(1)),
            ],
            out_specs=pl.BlockSpec((1, num_m, c_out, tile_t),
                                   lambda bi, ti: (bi, 0, 0, ti)),
        ),
        compiler_params=pltpu.CompilerParams(
            dimension_semantics=("parallel", "parallel"),
            vmem_limit_bytes=vmem_limit),
        cost_estimate=cost,
    )(ctx, tgt, adj_c, mask_t, lmat, wbd, bias_col)

    return out


def graph_aggregation_ref(feat_context, feat_target, adj, missing_mask_context,
                          weight, bias, *, order: int):
    """Pure-JAX reference mirroring the PyTorch module (eval mode)."""
    ctx = jnp.transpose(feat_context, (0, 3, 1, 2))   # [b,t,num_n,d]
    tgt = jnp.transpose(feat_target, (0, 3, 1, 2))    # [b,t,num_m,d]
    keep = 1.0 - missing_mask_context                 # [b,t,num_n]
    outs = [tgt]
    for i in range(order):
        a = adj[:, i][:, None] * keep[:, :, None, :]                  # [b,t,num_m,num_n]
        norm_a = a / (jnp.sum(a, axis=-1, keepdims=True) + 1.0)
        agg = tgt + jnp.einsum('btmn,btnd->btmd', norm_a, ctx)
        outs.append(agg)
    cat = jnp.concatenate(outs, axis=-1)                              # [b,t,num_m,(order+1)d]
    y = jnp.einsum('btmc,oc->btmo', cat, weight) + bias
    y = jnp.maximum(y, 0.0)
    return jnp.transpose(y, (0, 2, 3, 1))                             # [b,num_m,c_out,t]


if __name__ == "__main__":
    # Small shapes consistent with the module.
    batch, num_n, num_m, d, t = 2, 8, 4, 8, 8
    order, c_out = 2, 16

    key = jax.random.PRNGKey(0)
    k1, k2, k3, k4, k5, k6 = jax.random.split(key, 6)

    feat_context = jax.random.normal(k1, (batch, num_n, d, t), jnp.float32)
    feat_target = jax.random.normal(k2, (batch, num_m, d, t), jnp.float32)
    adj = jax.random.uniform(k3, (batch, order, num_m, num_n), jnp.float32)
    missing_mask_context = (
        jax.random.uniform(k4, (batch, t, num_n)) < 0.3).astype(jnp.float32)

    # Deterministic 1x1-conv parameters: weight [c_out, (order+1)*d], bias [c_out].
    c_in_total = (order + 1) * d
    weight = jax.random.normal(k5, (c_out, c_in_total), jnp.float32) * 0.1
    bias = jax.random.normal(k6, (c_out,), jnp.float32) * 0.1

    ref = graph_aggregation_ref(feat_context, feat_target, adj,
                                missing_mask_context, weight, bias, order=order)

    # Exact (f32 MXU operands) path — tight parity with the reference.
    out_f32 = graph_aggregation_pallas(feat_context, feat_target, adj,
                                       missing_mask_context, weight, bias,
                                       order=order, matmul_dtype=jnp.float32)
    out_f32 = jax.block_until_ready(out_f32)
    assert out_f32.shape == (batch, num_m, c_out, t)
    assert jnp.allclose(out_f32, ref, atol=1e-4, rtol=1e-4), "f32 path mismatch vs reference"

    # Fast path (bf16 MXU operands, approx reciprocal) — inference-grade parity.
    out_bf16 = graph_aggregation_pallas(feat_context, feat_target, adj,
                                        missing_mask_context, weight, bias,
                                        order=order, matmul_dtype=jnp.bfloat16)
    out_bf16 = jax.block_until_ready(out_bf16)
    assert out_bf16.shape == (batch, num_m, c_out, t)
    assert jnp.allclose(out_bf16.astype(jnp.float32), ref, atol=1e-1, rtol=5e-2), \
        "bf16 path mismatch vs reference"

    print("KERNEL_OK")
</pallas_src>

<mosaic_0001>
module attributes {stable_mosaic.version = 11 : i64} {
  func.func @_graph_agg_kernel(%arg0: i32, %arg1: i32, %arg2: memref<1x8x8x8xf32, #tpu.memory_space<vmem>>, %arg3: memref<1x4x8x8xf32, #tpu.memory_space<vmem>>, %arg4: memref<1x2x4x8xf32, #tpu.memory_space<vmem>>, %arg5: memref<1x8x8xf32, #tpu.memory_space<vmem>>, %arg6: memref<1x2x64x64xf32, #tpu.memory_space<vmem>>, %arg7: memref<64x32xf32, #tpu.memory_space<vmem>>, %arg8: memref<16x1xf32, #tpu.memory_space<vmem>>, %arg9: memref<1x4x16x8xf32, #tpu.memory_space<vmem>>) attributes {dimension_semantics = [#tpu.dimension_semantics<parallel>, #tpu.dimension_semantics<parallel>], iteration_bounds = array<i64: 2, 1>, scalar_prefetch = 0 : i64, scratch_operands = 0 : i64, tpu.core_type = #tpu.core_type<tc>, window_params = [{transform_indices = @transform_0, window_bounds = array<i64: 1, 8, 8, 8>}, {transform_indices = @transform_1, window_bounds = array<i64: 1, 4, 8, 8>}, {pipeline_mode = #tpu.pipeline_mode<synchronous>, transform_indices = @transform_2, window_bounds = array<i64: 1, 2, 4, 8>}, {transform_indices = @transform_3, window_bounds = array<i64: 1, 8, 8>}, {pipeline_mode = #tpu.pipeline_mode<synchronous>, transform_indices = @transform_4, window_bounds = array<i64: 1, 2, 64, 64>}, {pipeline_mode = #tpu.pipeline_mode<synchronous>, transform_indices = @transform_5, window_bounds = array<i64: 64, 32>}, {pipeline_mode = #tpu.pipeline_mode<synchronous>, transform_indices = @transform_6, window_bounds = array<i64: 16, 1>}, {transform_indices = @transform_7, window_bounds = array<i64: 1, 4, 16, 8>}]} {
    %c0 = arith.constant 0 : index
    %c0_0 = arith.constant 0 : index
    %c0_1 = arith.constant 0 : index
    %0 = vector.load %arg5[%c0, %c0_0, %c0_1] : memref<1x8x8xf32, #tpu.memory_space<vmem>>, vector<1x8x8xf32>
    %1 = vector.shape_cast %0 : vector<1x8x8xf32> to vector<8x8xf32>
    %cst = arith.constant 1.000000e+00 : f32
    %2 = vector.broadcast %cst : f32 to vector<8x8xf32>
    %3 = arith.subf %2, %1 : vector<8x8xf32>
    %c0_2 = arith.constant 0 : index
    %c0_3 = arith.constant 0 : index
    %c0_4 = arith.constant 0 : index
    %c0_5 = arith.constant 0 : index
    %4 = vector.load %arg2[%c0_2, %c0_3, %c0_4, %c0_5] : memref<1x8x8x8xf32, #tpu.memory_space<vmem>>, vector<1x8x8x8xf32>
    %5 = vector.shape_cast %4 : vector<1x8x8x8xf32> to vector<8x8x8xf32>
    %6 = vector.shape_cast %3 : vector<8x8xf32> to vector<8x1x8xf32>
    %7 = vector.broadcast %6 : vector<8x1x8xf32> to vector<8x8x8xf32>
    %8 = arith.mulf %5, %7 : vector<8x8x8xf32>
    %9 = vector.shape_cast %8 : vector<8x8x8xf32> to vector<64x8xf32>
    %c0_6 = arith.constant 0 : index
    %c0_7 = arith.constant 0 : index
    %c0_8 = arith.constant 0 : index
    %c0_9 = arith.constant 0 : index
    %10 = vector.load %arg3[%c0_6, %c0_7, %c0_8, %c0_9] : memref<1x4x8x8xf32, #tpu.memory_space<vmem>>, vector<1x4x8x8xf32>
    %11 = vector.shape_cast %10 : vector<1x4x8x8xf32> to vector<4x8x8xf32>
    %12 = vector.shape_cast %11 : vector<4x8x8xf32> to vector<32x8xf32>
    %c0_10 = arith.constant 0 : index
    %c0_11 = arith.constant 0 : index
    %13 = vector.load %arg7[%c0_10, %c0_11] : memref<64x32xf32, #tpu.memory_space<vmem>>, vector<64x32xf32>
    %cst_12 = arith.constant dense<0.000000e+00> : vector<64x8xf32>
    %14 = tpu.matmul %13, %12, %cst_12 {dimension_numbers = #tpu.dot_dimension_numbers<[1], [0], [0], [1], [0, 0, 1, 1], [], []>} : vector<64x32xf32>, vector<32x8xf32>, vector<64x8xf32> -> vector<64x8xf32>
    %15 = vector.shape_cast %14 : vector<64x8xf32> to vector<4x16x8xf32>
    %c0_13 = arith.constant 0 : index
    %c0_14 = arith.constant 0 : index
    %16 = vector.load %arg8[%c0_13, %c0_14] : memref<16x1xf32, #tpu.memory_space<vmem>>, vector<16x1xf32>
    %17 = vector.shape_cast %16 : vector<16x1xf32> to vector<1x16x1xf32>
    %18 = vector.broadcast %17 : vector<1x16x1xf32> to vector<4x16x8xf32>
    %19 = arith.addf %15, %18 : vector<4x16x8xf32>
    %c0_15 = arith.constant 0 : index
    %c0_16 = arith.constant 0 : index
    %c0_17 = arith.constant 0 : index
    %c0_18 = arith.constant 0 : index
    %20 = vector.load %arg4[%c0_15, %c0_16, %c0_17, %c0_18] : memref<1x2x4x8xf32, #tpu.memory_space<vmem>>, vector<1x1x4x8xf32>
    %21 = vector.shape_cast %20 : vector<1x1x4x8xf32> to vector<4x8xf32>
    %cst_19 = arith.constant dense<0.000000e+00> : vector<4x8xf32>
    %22 = tpu.matmul %21, %3, %cst_19 {dimension_numbers = #tpu.dot_dimension_numbers<[1], [0], [0], [1], [0, 0, 1, 1], [], []>} : vector<4x8xf32>, vector<8x8xf32>, vector<4x8xf32> -> vector<4x8xf32>
    %cst_20 = arith.constant 1.000000e+00 : f32
    %23 = vector.broadcast %cst_20 : f32 to vector<4x8xf32>
    %24 = arith.addf %22, %23 : vector<4x8xf32>
    %cst_21 = arith.constant 1.000000e+00 : f32
    %25 = vector.broadcast %cst_21 : f32 to vector<4x8xf32>
    %26 = arith.divf %25, %24 : vector<4x8xf32>
    %c0_22 = arith.constant 0 : index
    %c0_23 = arith.constant 0 : index
    %c0_24 = arith.constant 0 : index
    %c0_25 = arith.constant 0 : index
    %27 = vector.load %arg6[%c0_22, %c0_23, %c0_24, %c0_25] : memref<1x2x64x64xf32, #tpu.memory_space<vmem>>, vector<1x1x64x64xf32>
    %28 = vector.shape_cast %27 : vector<1x1x64x64xf32> to vector<64x64xf32>
    %cst_26 = arith.constant dense<0.000000e+00> : vector<64x8xf32>
    %29 = tpu.matmul %28, %9, %cst_26 {dimension_numbers = #tpu.dot_dimension_numbers<[1], [0], [0], [1], [0, 0, 1, 1], [], []>} : vector<64x64xf32>, vector<64x8xf32>, vector<64x8xf32> -> vector<64x8xf32>
    %30 = vector.shape_cast %29 : vector<64x8xf32> to vector<4x16x8xf32>
    %31 = vector.shape_cast %26 : vector<4x8xf32> to vector<4x1x8xf32>
    %32 = vector.broadcast %31 : vector<4x1x8xf32> to vector<4x16x8xf32>
    %33 = arith.mulf %30, %32 : vector<4x16x8xf32>
    %34 = arith.addf %19, %33 : vector<4x16x8xf32>
    %c0_27 = arith.constant 0 : index
    %c1 = arith.constant 1 : index
    %c0_28 = arith.constant 0 : index
    %c0_29 = arith.constant 0 : index
    %35 = vector.load %arg4[%c0_27, %c1, %c0_28, %c0_29] : memref<1x2x4x8xf32, #tpu.memory_space<vmem>>, vector<1x1x4x8xf32>
    %36 = vector.shape_cast %35 : vector<1x1x4x8xf32> to vector<4x8xf32>
    %cst_30 = arith.constant dense<0.000000e+00> : vector<4x8xf32>
    %37 = tpu.matmul %36, %3, %cst_30 {dimension_numbers = #tpu.dot_dimension_numbers<[1], [0], [0], [1], [0, 0, 1, 1], [], []>} : vector<4x8xf32>, vector<8x8xf32>, vector<4x8xf32> -> vector<4x8xf32>
    %cst_31 = arith.constant 1.000000e+00 : f32
    %38 = vector.broadcast %cst_31 : f32 to vector<4x8xf32>
    %39 = arith.addf %37, %38 : vector<4x8xf32>
    %cst_32 = arith.constant 1.000000e+00 : f32
    %40 = vector.broadcast %cst_32 : f32 to vector<4x8xf32>
    %41 = arith.divf %40, %39 : vector<4x8xf32>
    %c0_33 = arith.constant 0 : index
    %c1_34 = arith.constant 1 : index
    %c0_35 = arith.constant 0 : index
    %c0_36 = arith.constant 0 : index
    %42 = vector.load %arg6[%c0_33, %c1_34, %c0_35, %c0_36] : memref<1x2x64x64xf32, #tpu.memory_space<vmem>>, vector<1x1x64x64xf32>
    %43 = vector.shape_cast %42 : vector<1x1x64x64xf32> to vector<64x64xf32>
    %cst_37 = arith.constant dense<0.000000e+00> : vector<64x8xf32>
    %44 = tpu.matmul %43, %9, %cst_37 {dimension_numbers = #tpu.dot_dimension_numbers<[1], [0], [0], [1], [0, 0, 1, 1], [], []>} : vector<64x64xf32>, vector<64x8xf32>, vector<64x8xf32> -> vector<64x8xf32>
    %45 = vector.shape_cast %44 : vector<64x8xf32> to vector<4x16x8xf32>
    %46 = vector.shape_cast %41 : vector<4x8xf32> to vector<4x1x8xf32>
    %47 = vector.broadcast %46 : vector<4x1x8xf32> to vector<4x16x8xf32>
    %48 = arith.mulf %45, %47 : vector<4x16x8xf32>
    %49 = arith.addf %34, %48 : vector<4x16x8xf32>
    %cst_38 = arith.constant 0.000000e+00 : f32
    %50 = vector.broadcast %cst_38 : f32 to vector<4x16x8xf32>
    %51 = arith.maximumf %49, %50 : vector<4x16x8xf32>
    %c0_39 = arith.constant 0 : index
    %c0_40 = arith.constant 0 : index
    %c0_41 = arith.constant 0 : index
    %c0_42 = arith.constant 0 : index
    %52 = vector.load %arg9[%c0_39, %c0_40, %c0_41, %c0_42] : memref<1x4x16x8xf32, #tpu.memory_space<vmem>>, vector<1x4x16x8xf32>
    %53 = vector.shape_cast %52 : vector<1x4x16x8xf32> to vector<4x16x8xf32>
    %54 = vector.shape_cast %51 : vector<4x16x8xf32> to vector<1x4x16x8xf32>
    tpu.vector_store %arg9[%c0_39, %c0_40, %c0_41, %c0_42], %54 {strides = array<i32>} : memref<1x4x16x8xf32, #tpu.memory_space<vmem>>, vector<1x4x16x8xf32>,
    return
  }
  func.func @transform_0(%arg0: i32, %arg1: i32) -> (i32, i32, i32, i32) {
    %c0_i32 = arith.constant 0 : i32
    %c0_i32_0 = arith.constant 0 : i32
    %c0_i32_1 = arith.constant 0 : i32
    return %arg0, %c0_i32, %c0_i32_0, %arg1 : i32, i32, i32, i32
  }
  func.func @transform_1(%arg0: i32, %arg1: i32) -> (i32, i32, i32, i32) {
    %c0_i32 = arith.constant 0 : i32
    %c0_i32_0 = arith.constant 0 : i32
    %c0_i32_1 = arith.constant 0 : i32
    return %arg0, %c0_i32, %c0_i32_0, %arg1 : i32, i32, i32, i32
  }
  func.func @transform_2(%arg0: i32, %arg1: i32) -> (i32, i32, i32, i32) {
    %c0_i32 = arith.constant 0 : i32
    %c0_i32_0 = arith.constant 0 : i32
    %c0_i32_1 = arith.constant 0 : i32
    %c0_i32_2 = arith.constant 0 : i32
    return %arg0, %c0_i32, %c0_i32_0, %c0_i32_1 : i32, i32, i32, i32
  }
  func.func @transform_3(%arg0: i32, %arg1: i32) -> (i32, i32, i32) {
    %c0_i32 = arith.constant 0 : i32
    %c0_i32_0 = arith.constant 0 : i32
    return %arg0, %c0_i32, %arg1 : i32, i32, i32
  }
  func.func @transform_4(%arg0: i32, %arg1: i32) -> (i32, i32, i32, i32) {
    %c0_i32 = arith.constant 0 : i32
    %c0_i32_0 = arith.constant 0 : i32
    %c0_i32_1 = arith.constant 0 : i32
    %c0_i32_2 = arith.constant 0 : i32
    return %arg0, %c0_i32, %c0_i32_0, %c0_i32_1 : i32, i32, i32, i32
  }
  func.func @transform_5(%arg0: i32, %arg1: i32) -> (i32, i32) {
    %c0_i32 = arith.constant 0 : i32
    %c0_i32_0 = arith.constant 0 : i32
    %c0_i32_1 = arith.constant 0 : i32
    return %c0_i32, %c0_i32_0 : i32, i32
  }
  func.func @transform_6(%arg0: i32, %arg1: i32) -> (i32, i32) {
    %c0_i32 = arith.constant 0 : i32
    %c0_i32_0 = arith.constant 0 : i32
    %c0_i32_1 = arith.constant 0 : i32
    return %c0_i32, %c0_i32_0 : i32, i32
  }
  func.func @transform_7(%arg0: i32, %arg1: i32) -> (i32, i32, i32, i32) {
    %c0_i32 = arith.constant 0 : i32
    %c0_i32_0 = arith.constant 0 : i32
    %c0_i32_1 = arith.constant 0 : i32
    return %arg0, %c0_i32, %c0_i32_0, %arg1 : i32, i32, i32, i32
  }
}

</mosaic_0001>

<llo_original>
// kernel: tpu_custom_call.1
$region0: #{tpu_custom_call.1}
  #allocation0 [shape = 'u32[]', space=smem, size = 0x4, offset = 0x4, fixed_abs, tag = 'smem constant byte address 0x4 - core index']
  #allocation1 [shape = 'u32[144,128]{1,0:T(1,128)}', space=vmem, size = 0x12000, scoped, tag = 'internal scratch']
  %s0 = inlined_call_operand.hbm [shape: f32[2,8,8,8], index: 0, kind: input, shape index: {}]
  %s1 = inlined_call_operand.vmem [shape: f32[2,4,8,8], index: 1, kind: input, shape index: {}]
  %s2 = inlined_call_operand.vmem [shape: f32[2,2,4,8], index: 2, kind: input, shape index: {}]
  %s3 = inlined_call_operand.vmem [shape: f32[2,8,8], index: 3, kind: input, shape index: {}]
  %s4 = inlined_call_operand.hbm [shape: f32[2,2,64,64], index: 4, kind: input, shape index: {}]
  %s5 = inlined_call_operand.vmem [shape: f32[64,32], index: 5, kind: input, shape index: {}]
  %s6 = inlined_call_operand.vmem [shape: f32[16,1], index: 6, kind: input, shape index: {}]
  %s7 = inlined_call_operand.vmem [shape: f32[2,4,16,8], index: 7, kind: output, shape index: {}]
  %s8 = sld [smem:[#allocation0]]
  $region69: #{tpu_custom_call.1} parent=0
    _
  %s10 = ssub.s32 1, %s8
  %s11 = scalar_select 0, %s10, %s8
  $region1: #{tpu_custom_call.1} parent=0
    #allocation2 [shape = 'u8[65536]{0}', space=vmem, size = 0x10000, scoped, tag = 'input window, operand 0']
    #allocation3 [shape = 's32[2]{0}', space=sflag, size = 0x8, scoped, tag = 'scoped memory for tpu_custom_call.1']
    #allocation4 [shape = 'u8[65536]{0}', space=vmem, size = 0x10000, scoped, tag = 'input window, operand 4, single buffered']
    #allocation5 [shape = 's32[1]{0}', space=sflag, size = 0x4, scoped, tag = 'scoped memory for tpu_custom_call.1']
    %12 = vsyncpa [#allocation3], 0
    %s13 = scalar_lea.sflag [#allocation3], 1
    %14 = vsyncpa %s13, 0
    %15 = vsyncpa [#allocation5], 0
    loop: start=0, step=1, limit=4
    $region2: #{tpu_custom_call.1} parent=1 // loop_pre_header
      _
    $region3: #{tpu_custom_call.1} parent=1 // loop_header
      %s17 = sphi 0, %s21
      %p18 = scmp.ge.s32.totalorder %s17, 4
      %s24 = sphi 0, %s36
      %s25 = sphi 0, %s32
      %s26 = sphi 0, %s24
      %s27 = sphi 0, %s25
      %s28 = sphi 0, %s26
      %s29 = sphi 0, %s27
      %s41 = sphi 0, %s43
      %s44 = sphi 0, %s41
      %s45 = sphi 0, %s44
      %s61 = sphi 0, %s45
      %s69 = sphi 0, %s71
      %s72 = sphi 0, %s69
      %s73 = sphi 0, %s72
      %s89 = sphi 0, %s73
      %s95 = sphi 0, %s97
      %s98 = sphi 0, %s95
      %s99 = sphi 0, %s98
      %s115 = sphi 0, %s99
      %s123 = sphi 0, %s125
      %s126 = sphi 0, %s123
      %s127 = sphi 0, %s126
      %s143 = sphi 0, %s127
      %s149 = sphi 0, %s151
      %s152 = sphi 0, %s149
      %s153 = sphi 0, %s152
      %s169 = sphi 0, %s153
      %s173 = sphi 0, %s173
      %s175 = sphi 0, %s173
      %s176 = sphi 0, %s175
      %s190 = sphi 0, %s176
      %s194 = sphi 0, %s194
      %s196 = sphi 0, %s194
      %s197 = sphi 0, %s196
      %s211 = sphi 0, %s197
      %s219 = sphi 0, %s221
      %s222 = sphi 0, %s219
      %s223 = sphi 0, %s222
      %s239 = sphi 0, %s223
    $region4: #{tpu_custom_call.1} parent=1 // loop_header_branch
      %20 = sbr.rel (%p18) target = $region8
    $region5: #{tpu_custom_call.1} parent=1 // loop_body
      %s22 = ssub.s32 %s17, 1
      %s23 = ssub.s32 %s17, 2
      %s30 = sadd.s32 1, %s25
      %p31 = scmp.ge.s32.totalorder %s30, 1
      %s32 = scalar_select %p31, 0, %s30
      %s33 = sadd.s32 1, %s24
      %s34 = scalar_select %p31, %s33, %s24
      %p35 = scmp.ge.s32.totalorder %s34, 2
      %s36 = scalar_select %p35, 0, %s34
      %s37 = ssub.s32 %s24, %s36
      %s38 = ssub.s32 %s25, %s32
      %s39 = sor.u32 %s37, %s38
      %p40 = scmp.eq.s32.totalorder %s39, 0
      %s42 = sadd.s32 %s41, 1
      %s43 = scalar_select %p40, %s41, %s42
      %p46 = pneg %p40
      %p47 = scmp.eq.s32.totalorder %s17, 1
      %p48 = por %p46, %p47
      %p49 = scmp.ne.s32.totalorder %s41, %s44
      %p50 = scmp.eq.s32.totalorder %s17, 0
      %p51 = por %p49, %p50
      %p52 = scmp.ne.s32.totalorder %s41, %s44
      %p53 = scmp.eq.s32.totalorder %s22, 1
      %p54 = por %p52, %p53
      %p55 = scmp.ne.s32.totalorder %s44, %s45
      %p56 = scmp.eq.s32.totalorder %s22, 0
      %p57 = por %p55, %p56
      %p58 = scmp.ne.s32.totalorder %s44, %s45
      %p59 = scmp.eq.s32.totalorder %s23, 1
      %p60 = por %p58, %p59
      %p62 = scmp.ne.s32.totalorder %s45, %s61
      %p63 = scmp.eq.s32.totalorder %s23, 0
      %p64 = por %p62, %p63
      %s65 = ssub.s32 %s24, %s36
      %s66 = ssub.s32 %s25, %s32
      %s67 = sor.u32 %s65, %s66
      %p68 = scmp.eq.s32.totalorder %s67, 0
      %s70 = sadd.s32 %s69, 1
      %s71 = scalar_select %p68, %s69, %s70
      %p74 = pneg %p68
      %p75 = scmp.eq.s32.totalorder %s17, 1
      %p76 = por %p74, %p75
      %p77 = scmp.ne.s32.totalorder %s69, %s72
      %p78 = scmp.eq.s32.totalorder %s17, 0
      %p79 = por %p77, %p78
      %p80 = scmp.ne.s32.totalorder %s69, %s72
      %p81 = scmp.eq.s32.totalorder %s22, 1
      %p82 = por %p80, %p81
      %p83 = scmp.ne.s32.totalorder %s72, %s73
      %p84 = scmp.eq.s32.totalorder %s22, 0
      %p85 = por %p83, %p84
      %p86 = scmp.ne.s32.totalorder %s72, %s73
      %p87 = scmp.eq.s32.totalorder %s23, 1
      %p88 = por %p86, %p87
      %p90 = scmp.ne.s32.totalorder %s73, %s89
      %p91 = scmp.eq.s32.totalorder %s23, 0
      %p92 = por %p90, %p91
      %s93 = ssub.s32 %s24, %s36
      %p94 = scmp.eq.s32.totalorder %s93, 0
      %s96 = sadd.s32 %s95, 1
      %s97 = scalar_select %p94, %s95, %s96
      %p100 = pneg %p94
      %p101 = scmp.eq.s32.totalorder %s17, 1
      %p102 = por %p100, %p101
      %p103 = scmp.ne.s32.totalorder %s95, %s98
      %p104 = scmp.eq.s32.totalorder %s17, 0
      %p105 = por %p103, %p104
      %p106 = scmp.ne.s32.totalorder %s95, %s98
      %p107 = scmp.eq.s32.totalorder %s22, 1
      %p108 = por %p106, %p107
      %p109 = scmp.ne.s32.totalorder %s98, %s99
      %p110 = scmp.eq.s32.totalorder %s22, 0
      %p111 = por %p109, %p110
      %p112 = scmp.ne.s32.totalorder %s98, %s99
      %p113 = scmp.eq.s32.totalorder %s23, 1
      %p114 = por %p112, %p113
      %p116 = scmp.ne.s32.totalorder %s99, %s115
      %p117 = scmp.eq.s32.totalorder %s23, 0
      %p118 = por %p116, %p117
      %s119 = ssub.s32 %s24, %s36
      %s120 = ssub.s32 %s25, %s32
      %s121 = sor.u32 %s119, %s120
      %p122 = scmp.eq.s32.totalorder %s121, 0
      %s124 = sadd.s32 %s123, 1
      %s125 = scalar_select %p122, %s123, %s124
      %p128 = pneg %p122
      %p129 = scmp.eq.s32.totalorder %s17, 1
      %p130 = por %p128, %p129
      %p131 = scmp.ne.s32.totalorder %s123, %s126
      %p132 = scmp.eq.s32.totalorder %s17, 0
      %p133 = por %p131, %p132
      %p134 = scmp.ne.s32.totalorder %s123, %s126
      %p135 = scmp.eq.s32.totalorder %s22, 1
      %p136 = por %p134, %p135
      %p137 = scmp.ne.s32.totalorder %s126, %s127
      %p138 = scmp.eq.s32.totalorder %s22, 0
      %p139 = por %p137, %p138
      %p140 = scmp.ne.s32.totalorder %s126, %s127
      %p141 = scmp.eq.s32.totalorder %s23, 1
      %p142 = por %p140, %p141
      %p144 = scmp.ne.s32.totalorder %s127, %s143
      %p145 = scmp.eq.s32.totalorder %s23, 0
      %p146 = por %p144, %p145
      %s147 = ssub.s32 %s24, %s36
      %p148 = scmp.eq.s32.totalorder %s147, 0
      %s150 = sadd.s32 %s149, 1
      %s151 = scalar_select %p148, %s149, %s150
      %p154 = pneg %p148
      %p155 = scmp.eq.s32.totalorder %s17, 1
      %p156 = por %p154, %p155
      %p157 = scmp.ne.s32.totalorder %s149, %s152
      %p158 = scmp.eq.s32.totalorder %s17, 0
      %p159 = por %p157, %p158
      %p160 = scmp.ne.s32.totalorder %s149, %s152
      %p161 = scmp.eq.s32.totalorder %s22, 1
      %p162 = por %p160, %p161
      %p163 = scmp.ne.s32.totalorder %s152, %s153
      %p164 = scmp.eq.s32.totalorder %s22, 0
      %p165 = por %p163, %p164
      %p166 = scmp.ne.s32.totalorder %s152, %s153
      %p167 = scmp.eq.s32.totalorder %s23, 1
      %p168 = por %p166, %p167
      %p170 = scmp.ne.s32.totalorder %s153, %s169
      %p171 = scmp.eq.s32.totalorder %s23, 0
      %p172 = por %p170, %p171
      %s174 = sadd.s32 %s173, 1
      %p177 = scmp.eq.s32.totalorder %s17, 1
      %p178 = scmp.ne.s32.totalorder %s173, %s175
      %p179 = scmp.eq.s32.totalorder %s17, 0
      %p180 = por %p178, %p179
      %p181 = scmp.ne.s32.totalorder %s173, %s175
      %p182 = scmp.eq.s32.totalorder %s22, 1
      %p183 = por %p181, %p182
      %p184 = scmp.ne.s32.totalorder %s175, %s176
      %p185 = scmp.eq.s32.totalorder %s22, 0
      %p186 = por %p184, %p185
      %p187 = scmp.ne.s32.totalorder %s175, %s176
      %p188 = scmp.eq.s32.totalorder %s23, 1
      %p189 = por %p187, %p188
      %p191 = scmp.ne.s32.totalorder %s176, %s190
      %p192 = scmp.eq.s32.totalorder %s23, 0
      %p193 = por %p191, %p192
      %s195 = sadd.s32 %s194, 1
      %p198 = scmp.eq.s32.totalorder %s17, 1
      %p199 = scmp.ne.s32.totalorder %s194, %s196
      %p200 = scmp.eq.s32.totalorder %s17, 0
      %p201 = por %p199, %p200
      %p202 = scmp.ne.s32.totalorder %s194, %s196
      %p203 = scmp.eq.s32.totalorder %s22, 1
      %p204 = por %p202, %p203
      %p205 = scmp.ne.s32.totalorder %s196, %s197
      %p206 = scmp.eq.s32.totalorder %s22, 0
      %p207 = por %p205, %p206
      %p208 = scmp.ne.s32.totalorder %s196, %s197
      %p209 = scmp.eq.s32.totalorder %s23, 1
      %p210 = por %p208, %p209
      %p212 = scmp.ne.s32.totalorder %s197, %s211
      %p213 = scmp.eq.s32.totalorder %s23, 0
      %p214 = por %p212, %p213
      %s215 = ssub.s32 %s24, %s36
      %s216 = ssub.s32 %s25, %s32
      %s217 = sor.u32 %s215, %s216
      %p218 = scmp.eq.s32.totalorder %s217, 0
      %s220 = sadd.s32 %s219, 1
      %s221 = scalar_select %p218, %s219, %s220
      %p224 = pneg %p218
      %p225 = scmp.eq.s32.totalorder %s17, 1
      %p226 = por %p224, %p225
      %p227 = scmp.ne.s32.totalorder %s219, %s222
      %p228 = scmp.eq.s32.totalorder %s17, 0
      %p229 = por %p227, %p228
      %p230 = scmp.ne.s32.totalorder %s219, %s222
      %p231 = scmp.eq.s32.totalorder %s22, 1
      %p232 = por %p230, %p231
      %p233 = scmp.ne.s32.totalorder %s222, %s223
      %p234 = scmp.eq.s32.totalorder %s22, 0
      %p235 = por %p233, %p234
      %p236 = scmp.ne.s32.totalorder %s222, %s223
      %p237 = scmp.eq.s32.totalorder %s23, 1
      %p238 = por %p236, %p237
      %p240 = scmp.ne.s32.totalorder %s223, %s239
      %p241 = scmp.eq.s32.totalorder %s23, 0
      %p242 = por %p240, %p241
      %p243 = scmp.le.s32.totalorder 1, %s17
      %p244 = scmp.lt.s32.totalorder %s17, 3
      %p245 = pnand %p243, %p244
      %p246 = pneg %p245
      // Predicated region
      $region9: #{tpu_custom_call.1} parent=5 // pred_check
        _
      $region10: #{tpu_custom_call.1} parent=5 // pred_check_branch
        %248 = sbr.rel (%p245) target = $region12
      $region11: #{tpu_custom_call.1} parent=5 // pred_region
        %s249 = ssub.s32 %s17, 1
        // Predicated region
        $region13: #{tpu_custom_call.1} parent=11 // pred_check
          %p250 = pneg %p111
        $region14: #{tpu_custom_call.1} parent=11 // pred_check_branch
          %252 = sbr.rel (%p250) target = $region16
        $region15: #{tpu_custom_call.1} parent=11 // pred_region
          %p253 = scmp.lt.s32.totalorder %s26, 1
          %s254 = scalar_select %p253, %s26, 1
          %s255 = smul.addr %s254, 2
          %s256 = smul.addr %s255, 4
          %s257 = scalar_lea.vmem %s2, %s256
        $region16: #{tpu_custom_call.1} parent=11 // pred_fallthru
          _
        // Predicated region
        $region17: #{tpu_custom_call.1} parent=11 // pred_check
          %p258 = pneg %p165
        $region18: #{tpu_custom_call.1} parent=11 // pred_check_branch
          %260 = sbr.rel (%p258) target = $region20
        $region19: #{tpu_custom_call.1} parent=11 // pred_region
          %s262 = ssub.s32 2048, 2048
          %263 = vsyncadd [#allocation5], %s262
          %s264 = smul.addr %s26, 16
          %s265 = smul.addr %s264, 128
          %s266 = scalar_lea.hbm %s4, %s265
          %s267 = sshll.u32 [#allocation4], 4
          %s268 = int_to_ptr.vmem [resolvable:$true] %s267
          %273 = dma.hbm_to_vmem [thread:$0]  %s266, 2048, %s268, [#allocation5], 128, 128, 8
        $region20: #{tpu_custom_call.1} parent=11 // pred_fallthru
          _
        // Predicated region
        $region21: #{tpu_custom_call.1} parent=11 // pred_check
          %p274 = pneg %p186
        $region22: #{tpu_custom_call.1} parent=11 // pred_check_branch
          %276 = sbr.rel (%p274) target = $region24
        $region23: #{tpu_custom_call.1} parent=11 // pred_region
          _
        $region24: #{tpu_custom_call.1} parent=11 // pred_fallthru
          _
        // Predicated region
        $region25: #{tpu_custom_call.1} parent=11 // pred_check
          %p277 = pneg %p207
        $region26: #{tpu_custom_call.1} parent=11 // pred_check_branch
          %279 = sbr.rel (%p277) target = $region28
        $region27: #{tpu_custom_call.1} parent=11 // pred_region
          _
        $region28: #{tpu_custom_call.1} parent=11 // pred_fallthru
          _
      $region12: #{tpu_custom_call.1} parent=5 // pred_fallthru
        _
      %p280 = scmp.lt.s32.totalorder %s17, 2
      // Predicated region
      $region29: #{tpu_custom_call.1} parent=5 // pred_check
        %p281 = pneg %p280
      $region30: #{tpu_custom_call.1} parent=5 // pred_check_branch
        %283 = sbr.rel (%p281) target = $region32
      $region31: #{tpu_custom_call.1} parent=5 // pred_region
        // Predicated region
        $region33: #{tpu_custom_call.1} parent=31 // pred_check
          %p284 = pneg %p51
        $region34: #{tpu_custom_call.1} parent=31 // pred_check_branch
          %286 = sbr.rel (%p284) target = $region36
        $region35: #{tpu_custom_call.1} parent=31 // pred_region
          %s287 = sand.u32 %s41, 1
          %s288 = scalar_lea.sflag [#allocation3], %s287
          %s289 = sand.u32 %s41, 1
          %s290 = smul.addr %s289, 64
          %s291 = scalar_lea.vmem [#allocation2], %s290
          %s293 = ssub.s32 1024, 1024
          %294 = vsyncadd %s288, %s293
          %s295 = smul.addr %s24, 8
          %s296 = sadd.s32 %s25, %s295
          %s297 = smul.addr %s296, 128
          %s298 = scalar_lea.hbm %s0, %s297
          %s299 = sshll.u32 %s291, 4
          %s300 = int_to_ptr.vmem [resolvable:$true] %s299
          %305 = dma.hbm_to_vmem [thread:$0]  %s298, 1024, %s300, %s288, 128, 128, 8
        $region36: #{tpu_custom_call.1} parent=31 // pred_fallthru
          _
        // Predicated region
        $region37: #{tpu_custom_call.1} parent=31 // pred_check
          %p306 = pneg %p79
        $region38: #{tpu_custom_call.1} parent=31 // pred_check_branch
          %308 = sbr.rel (%p306) target = $region40
        $region39: #{tpu_custom_call.1} parent=31 // pred_region
          %p309 = scmp.lt.s32.totalorder %s24, 1
          %s310 = scalar_select %p309, %s24, 1
          %p311 = scmp.lt.s32.totalorder %s25, 0
          %s312 = scalar_select %p311, %s25, 0
          %s313 = smul.addr %s310, 4
          %s314 = sadd.s32 %s312, %s313
          %s315 = smul.addr %s314, 8
          %s316 = scalar_lea.vmem %s1, %s315
        $region40: #{tpu_custom_call.1} parent=31 // pred_fallthru
          _
        // Predicated region
        $region41: #{tpu_custom_call.1} parent=31 // pred_check
          %p317 = pneg %p133
        $region42: #{tpu_custom_call.1} parent=31 // pred_check_branch
          %319 = sbr.rel (%p317) target = $region44
        $region43: #{tpu_custom_call.1} parent=31 // pred_region
          %p320 = scmp.lt.s32.totalorder %s24, 1
          %s321 = scalar_select %p320, %s24, 1
          %p322 = scmp.lt.s32.totalorder %s25, 0
          %s323 = scalar_select %p322, %s25, 0
          %s324 = sadd.s32 %s323, %s321
          %s325 = smul.addr %s324, 8
          %s326 = scalar_lea.vmem %s3, %s325
        $region44: #{tpu_custom_call.1} parent=31 // pred_fallthru
          _
      $region32: #{tpu_custom_call.1} parent=5 // pred_fallthru
        _
      %p327 = scmp.le.s32.totalorder 1, %s17
      %p328 = scmp.lt.s32.totalorder %s17, 3
      %p329 = pnand %p327, %p328
      %p330 = pneg %p329
      // Predicated region
      $region45: #{tpu_custom_call.1} parent=5 // pred_check
        _
      $region46: #{tpu_custom_call.1} parent=5 // pred_check_branch
        %332 = sbr.rel (%p329) target = $region48
      $region47: #{tpu_custom_call.1} parent=5 // pred_region
        %s333 = ssub.s32 %s17, 1
        %s334 = sand.u32 %s44, 1
        %s335 = scalar_lea.sflag [#allocation3], %s334
        %s336 = sand.u32 %s44, 1
        %s337 = smul.addr %s336, 64
        %s338 = scalar_lea.vmem [#allocation2], %s337
        // Predicated region
        $region49: #{tpu_custom_call.1} parent=47 // pred_check
          %p339 = pneg %p57
        $region50: #{tpu_custom_call.1} parent=47 // pred_check_branch
          %341 = sbr.rel (%p339) target = $region52
        $region51: #{tpu_custom_call.1} parent=47 // pred_region
          %342 = dma.done %s335, 1024
        $region52: #{tpu_custom_call.1} parent=47 // pred_fallthru
          _
        // Predicated region
        $region53: #{tpu_custom_call.1} parent=47 // pred_check
          %p343 = pneg %p165
        $region54: #{tpu_custom_call.1} parent=47 // pred_check_branch
          %345 = sbr.rel (%p343) target = $region56
        $region55: #{tpu_custom_call.1} parent=47 // pred_region
          %346 = dma.done [#allocation5], 2048
        $region56: #{tpu_custom_call.1} parent=47 // pred_fallthru
          _
        %s347 = sand.u32 %s44, 1
        %s348 = scalar_lea.sflag [#allocation3], %s347
        %s349 = sand.u32 %s44, 1
        %s350 = smul.addr %s349, 64
        %s351 = scalar_lea.vmem [#allocation2], %s350
        %p352 = pneg %p57
        %p353 = pneg %p54
        %p354 = scmp.lt.s32.totalorder %s26, 1
        %s355 = scalar_select %p354, %s26, 1
        %p356 = scmp.lt.s32.totalorder %s27, 0
        %s357 = scalar_select %p356, %s27, 0
        %s358 = smul.addr %s355, 4
        %s359 = sadd.s32 %s357, %s358
        %s360 = smul.addr %s359, 8
        %s361 = scalar_lea.vmem %s1, %s360
        %p362 = pneg %p85
        %p363 = pneg %p82
        %p364 = scmp.lt.s32.totalorder %s26, 1
        %s365 = scalar_select %p364, %s26, 1
        %s366 = smul.addr %s365, 2
        %s367 = smul.addr %s366, 4
        %s368 = scalar_lea.vmem %s2, %s367
        %p369 = pneg %p111
        %p370 = pneg %p108
        %p371 = scmp.lt.s32.totalorder %s26, 1
        %s372 = scalar_select %p371, %s26, 1
        %p373 = scmp.lt.s32.totalorder %s27, 0
        %s374 = scalar_select %p373, %s27, 0
        %s375 = sadd.s32 %s374, %s372
        %s376 = smul.addr %s375, 8
        %s377 = scalar_lea.vmem %s3, %s376
        %p378 = pneg %p139
        %p379 = pneg %p136
        %p380 = pneg %p165
        %p381 = pneg %p162
        %p382 = pneg %p186
        %p383 = pneg %p183
        %p384 = pneg %p207
        %p385 = pneg %p204
        %p386 = pneg %p235
        %p387 = pneg %p232
        %p388 = scmp.lt.s32.totalorder %s26, 1
        %s389 = scalar_select %p388, %s26, 1
        %p390 = scmp.lt.s32.totalorder %s27, 0
        %s391 = scalar_select %p390, %s27, 0
        %s392 = smul.addr %s389, 8
        %s393 = sadd.s32 %s391, %s392
        %s394 = smul.addr %s393, 8
        %s395 = scalar_lea.vmem %s7, %s394
        %p396 = scmp.lt.s32.totalorder %s26, 1
        %s397 = scalar_select %p396, %s26, 1
        %p398 = scmp.lt.s32.totalorder %s27, 0
        %s399 = scalar_select %p398, %s27, 0
        %s400 = smul.addr %s397, 4
        %s401 = sadd.s32 %s399, %s400
        %s402 = smul.addr %s401, 8
        %s403 = scalar_lea.vmem %s1, %s402
        %p404 = scmp.lt.s32.totalorder %s26, 1
        %s405 = scalar_select %p404, %s26, 1
        %s406 = smul.addr %s405, 2
        %s407 = smul.addr %s406, 4
        %s408 = scalar_lea.vmem %s2, %s407
        %p409 = scmp.lt.s32.totalorder %s26, 1
        %s410 = scalar_select %p409, %s26, 1
        %p411 = scmp.lt.s32.totalorder %s27, 0
        %s412 = scalar_select %p411, %s27, 0
        %s413 = sadd.s32 %s412, %s410
        %s414 = smul.addr %s413, 8
        %s415 = scalar_lea.vmem %s3, %s414
        %p416 = scmp.lt.s32.totalorder %s26, 1
        %s417 = scalar_select %p416, %s26, 1
        %p418 = scmp.lt.s32.totalorder %s27, 0
        %s419 = scalar_select %p418, %s27, 0
        %s420 = smul.addr %s417, 8
        %s421 = sadd.s32 %s419, %s420
        %s422 = smul.addr %s421, 8
        %s423 = scalar_lea.vmem %s7, %s422
        %v424 = vld [vmem:[%s415] sm:$0xff]
        %v425 = vsub.f32 1.0, %v424
        %v426 = vld [vmem:[%s338] sm:$0xff]
        %v427 = vld [vmem:[%s338 + $0x8] sm:$0xff]
        %v428 = vld [vmem:[%s338 + $0x10] sm:$0xff]
        %v429 = vld [vmem:[%s338 + $0x18] sm:$0xff]
        %v430 = vld [vmem:[%s338 + $0x20] sm:$0xff]
        %v431 = vld [vmem:[%s338 + $0x28] sm:$0xff]
        %v432 = vld [vmem:[%s338 + $0x30] sm:$0xff]
        %v433 = vld [vmem:[%s338 + $0x38] sm:$0xff]
        %v435 = vcombine.high %v425, %v425
        %v437 = vunpack.c.l.s4 1966171168
        %v438 = vunpack.c.0.s8 %v437
        %v439 = vlaneseq
        %v440 = vshrl.u32 %v439, 7
        %v441 = vsub.s32 %v438, %v440
        %v442 = vrot.slane %v425, %v441
        %v444 = vunpack.c.l.s4 1966171168
        %v445 = vunpack.c.0.s8 %v444
        %v446 = vlaneseq
        %v447 = vshrl.u32 %v446, 7
        %v448 = vsub.s32 %v445, %v447
        %v449 = vrot.slane %v435, %v448
        %v450 = vcombine.high %v442, %v442
        %v451 = vcombine.high %v449, %v449
        %v453 = vunpack.c.l.s4 1966171168
        %v454 = vunpack.c.0.s8 %v453
        %v455 = vlaneseq
        %v456 = vshrl.u32 %v455, 7
        %v457 = vsub.s32 %v454, %v456
        %v458 = vrot.slane %v442, %v457
        %v460 = vunpack.c.l.s4 1966171168
        %v461 = vunpack.c.0.s8 %v460
        %v462 = vlaneseq
        %v463 = vshrl.u32 %v462, 7
        %v464 = vsub.s32 %v461, %v463
        %v465 = vrot.slane %v449, %v464
        %v467 = vunpack.c.l.s4 1966171168
        %v468 = vunpack.c.0.s8 %v467
        %v469 = vlaneseq
        %v470 = vshrl.u32 %v469, 7
        %v471 = vsub.s32 %v468, %v470
        %v472 = vrot.slane %v450, %v471
        %v474 = vunpack.c.l.s4 1966171168
        %v475 = vunpack.c.0.s8 %v474
        %v476 = vlaneseq
        %v477 = vshrl.u32 %v476, 7
        %v478 = vsub.s32 %v475, %v477
        %v479 = vrot.slane %v451, %v478
        %v480 = vcombine.high %v458, %v458
        %v481 = vcombine.high %v465, %v465
        %v482 = vcombine.high %v472, %v472
        %v483 = vcombine.high %v479, %v479
        %v484 = vlaneseq
        %v485 = vshrl.u32 %v484, 7
        %v486 = vsub.s32 0, %v485
        %v487 = vrot.slane %v458, %v486
        %v488 = vlaneseq
        %v489 = vshrl.u32 %v488, 7
        %v490 = vsub.s32 0, %v489
        %v491 = vrot.slane %v472, %v490
        %v492 = vlaneseq
        %v493 = vshrl.u32 %v492, 7
        %v494 = vsub.s32 0, %v493
        %v495 = vrot.slane %v480, %v494
        %v496 = vlaneseq
        %v497 = vshrl.u32 %v496, 7
        %v498 = vsub.s32 0, %v497
        %v499 = vrot.slane %v482, %v498
        %v500 = vlaneseq
        %v501 = vshrl.u32 %v500, 7
        %v502 = vsub.s32 0, %v501
        %v503 = vrot.slane %v465, %v502
        %v504 = vlaneseq
        %v505 = vshrl.u32 %v504, 7
        %v506 = vsub.s32 0, %v505
        %v507 = vrot.slane %v479, %v506
        %v508 = vlaneseq
        %v509 = vshrl.u32 %v508, 7
        %v510 = vsub.s32 0, %v509
        %v511 = vrot.slane %v481, %v510
        %v512 = vlaneseq
        %v513 = vshrl.u32 %v512, 7
        %v514 = vsub.s32 0, %v513
        %v515 = vrot.slane %v483, %v514
        %v524 = vmul.f32 %v426, %v487
        %v525 = vmul.f32 %v427, %v491
        %v526 = vmul.f32 %v428, %v495
        %v527 = vmul.f32 %v429, %v499
        %v528 = vmul.f32 %v430, %v503
        %v529 = vmul.f32 %v431, %v507
        %v530 = vmul.f32 %v432, %v511
        %v531 = vmul.f32 %v433, %v515
        %v532 = vld [vmem:[%s403] sm:$0xff]
        %v533 = vld [vmem:[%s403 + $0x8] sm:$0xff]
        %v534 = vld [vmem:[%s403 + $0x10] sm:$0xff]
        %v535 = vld [vmem:[%s403 + $0x18] sm:$0xff]
        %v536 = vld [vmem:[%s5] sm:$0xff]
        %v537 = vld [vmem:[%s5 + $0x8] sm:$0xff]
        %v538 = vld [vmem:[%s5 + $0x10] sm:$0xff]
        %v539 = vld [vmem:[%s5 + $0x18] sm:$0xff]
        %v540 = vld [vmem:[%s5 + $0x20] sm:$0xff]
        %v541 = vld [vmem:[%s5 + $0x28] sm:$0xff]
        %v542 = vld [vmem:[%s5 + $0x30] sm:$0xff]
        %v543 = vld [vmem:[%s5 + $0x38] sm:$0xff]
        %vm544 = vcmask 261120
        %v546 = vsel %vm544, %v536, 0
        %v549 = vsel %vm544, %v537, 0
        %v552 = vsel %vm544, %v538, 0
        %v555 = vsel %vm544, %v539, 0
        %v558 = vsel %vm544, %v540, 0
        %v561 = vsel %vm544, %v541, 0
        %v564 = vsel %vm544, %v542, 0
        %v567 = vsel %vm544, %v543, 0
        %569 = vmatprep.subr.mxu0 0.0
        %570 = vmatpush1.msra.mxu0 0.0
        %571 = vmatprep.subr.mxu0 0.0
        %572 = vmatpush1.msra.mxu0 0.0
        %573 = vmatprep.subr.mxu0 0.0
        %574 = vmatpush1.msra.mxu0 0.0
        %575 = vmatprep.subr.mxu0 0.0
        %576 = vmatpush1.msra.mxu0 0.0
        %577 = vmatprep.subr.mxu0 0.0
        %578 = vmatpush1.msra.mxu0 0.0
        %579 = vmatprep.subr.mxu0 0.0
        %580 = vmatpush1.msra.mxu0 0.0
        %581 = vmatprep.subr.mxu0 0.0
        %582 = vmatpush1.msra.mxu0 0.0
        %583 = vmatprep.subr.mxu0 0.0
        %584 = vmatpush1.msra.mxu0 0.0
        %585 = vmatprep.subr.mxu0 0.0
        %586 = vmatpush1.msra.mxu0 0.0
        %587 = vmatprep.subr.mxu0 0.0
        %588 = vmatpush1.msra.mxu0 0.0
        %589 = vmatprep.subr.mxu0 0.0
        %590 = vmatpush1.msra.mxu0 0.0
        %591 = vmatprep.subr.mxu0 0.0
        %592 = vmatpush1.msra.mxu0 0.0
        %593 = vmatprep.subr.mxu0 0.0
        %594 = vmatpush1.msra.mxu0 %v535
        %595 = vmatprep.subr.mxu0 0.0
        %596 = vmatpush1.msra.mxu0 %v534
        %597 = vmatprep.subr.mxu0 0.0
        %598 = vmatpush1.msra.mxu0 %v533
        %599 = vmatprep.subr.mxu0 0.0
        %600 = vmatpush1.msra.mxu0 %v532
        %601 = vmatprep.subr.mxu0 0.0
        %602 = vmatpush2.msra.mxu0 0.0
        %603 = vmatprep.subr.mxu0 0.0
        %604 = vmatpush2.msra.mxu0 0.0
        %605 = vmatprep.subr.mxu0 0.0
        %606 = vmatpush2.msra.mxu0 0.0
        %607 = vmatprep.subr.mxu0 0.0
        %608 = vmatpush2.msra.mxu0 0.0
        %609 = vmatprep.subr.mxu0 0.0
        %610 = vmatpush2.msra.mxu0 0.0
        %611 = vmatprep.subr.mxu0 0.0
        %612 = vmatpush2.msra.mxu0 0.0
        %613 = vmatprep.subr.mxu0 0.0
        %614 = vmatpush2.msra.mxu0 0.0
        %615 = vmatprep.subr.mxu0 0.0
        %616 = vmatpush2.msra.mxu0 0.0
        %617 = vmatprep.subr.mxu0 0.0
        %618 = vmatpush2.msra.mxu0 0.0
        %619 = vmatprep.subr.mxu0 0.0
        %620 = vmatpush2.msra.mxu0 0.0
        %621 = vmatprep.subr.mxu0 0.0
        %622 = vmatpush2.msra.mxu0 0.0
        %623 = vmatprep.subr.mxu0 0.0
        %624 = vmatpush2.msra.mxu0 0.0
        %625 = vmatprep.subr.mxu0 0.0
        %626 = vmatpush2.msra.mxu0 0.0
        %627 = vmatprep.subr.mxu0 0.0
        %628 = vmatpush2.msra.mxu0 0.0
        %629 = vmatprep.subr.mxu0 0.0
        %630 = vmatpush2.msra.mxu0 0.0
        %631 = vmatprep.subr.mxu0 0.0
        %632 = vmatpush2.msra.mxu0 0.0
        %633 = vmatprep.mubr.f32.mxu0 0.0
        %634 = vmatmul.mubr.f32.gmra.mxu0 %v546
        %v635 = vpop.f32.mrf.mxu0
        %v636 = vadd.f32 0.0, %v635
        %v637 = vpop.f32.mrf.mxu0
        %638 = vmatprep.mubr.f32.mxu0 0.0
        %639 = vmatmul.mubr.f32.gmra.mxu0 %v549
        %v640 = vpop.f32.mrf.mxu0
        %v641 = vadd.f32 0.0, %v640
        %v642 = vpop.f32.mrf.mxu0
        %643 = vmatprep.mubr.f32.mxu0 0.0
        %644 = vmatmul.mubr.f32.gmra.mxu0 %v552
        %v645 = vpop.f32.mrf.mxu0
        %v646 = vadd.f32 0.0, %v645
        %v647 = vpop.f32.mrf.mxu0
        %648 = vmatprep.mubr.f32.mxu0 0.0
        %649 = vmatmul.mubr.f32.gmra.mxu0 %v555
        %v650 = vpop.f32.mrf.mxu0
        %v651 = vadd.f32 0.0, %v650
        %v652 = vpop.f32.mrf.mxu0
        %653 = vmatprep.mubr.f32.mxu0 0.0
        %654 = vmatmul.mubr.f32.gmra.mxu0 %v558
        %v655 = vpop.f32.mrf.mxu0
        %v656 = vadd.f32 0.0, %v655
        %v657 = vpop.f32.mrf.mxu0
        %658 = vmatprep.mubr.f32.mxu0 0.0
        %659 = vmatmul.mubr.f32.gmra.mxu0 %v561
        %v660 = vpop.f32.mrf.mxu0
        %v661 = vadd.f32 0.0, %v660
        %v662 = vpop.f32.mrf.mxu0
        %663 = vmatprep.mubr.f32.mxu0 0.0
        %664 = vmatmul.mubr.f32.gmra.mxu0 %v564
        %v665 = vpop.f32.mrf.mxu0
        %v666 = vadd.f32 0.0, %v665
        %v667 = vpop.f32.mrf.mxu0
        %668 = vmatprep.mubr.f32.mxu0 0.0
        %669 = vmatmul.mubr.f32.gmra.mxu0 %v567
        %v670 = vpop.f32.mrf.mxu0
        %v671 = vadd.f32 0.0, %v670
        %v672 = vpop.f32.mrf.mxu0
        %673 = vdwg.mxu0
        %v674 = vld [vmem:[%s6] sm:$0xff]
        %v675 = vld [vmem:[%s6 + $0x8] sm:$0xff]
        %677 = vset.pattern.permute.xlu0 0
        %678 = vperm.xlu0 %677, %v674
        %v679 = vpop.permute.xlu0 %678
        %682 = vset.pattern.permute.xlu0 0
        %683 = vperm.xlu0 %682, %v675
        %v684 = vpop.permute.xlu0 %683
        %v686 = vadd.f32 %v636, %v679
        %v687 = vadd.f32 %v641, %v684
        %v688 = vadd.f32 %v646, %v679
        %v689 = vadd.f32 %v651, %v684
        %v690 = vadd.f32 %v656, %v679
        %v691 = vadd.f32 %v661, %v684
        %v692 = vadd.f32 %v666, %v679
        %v693 = vadd.f32 %v671, %v684
        %v694 = vld [vmem:[%s408] sm:$0xf]
        %vm695 = vcmask 64512
        %v697 = vsel %vm695, %v694, 0
        %699 = vmatprep.subr.mxu0 0.0
        %700 = vmatpush1.msra.mxu0 0.0
        %701 = vmatprep.subr.mxu0 0.0
        %702 = vmatpush1.msra.mxu0 0.0
        %703 = vmatprep.subr.mxu0 0.0
        %704 = vmatpush1.msra.mxu0 0.0
        %705 = vmatprep.subr.mxu0 0.0
        %706 = vmatpush1.msra.mxu0 0.0
        %707 = vmatprep.subr.mxu0 0.0
        %708 = vmatpush1.msra.mxu0 0.0
        %709 = vmatprep.subr.mxu0 0.0
        %710 = vmatpush1.msra.mxu0 0.0
        %711 = vmatprep.subr.mxu0 0.0
        %712 = vmatpush1.msra.mxu0 0.0
        %713 = vmatprep.subr.mxu0 0.0
        %714 = vmatpush1.msra.mxu0 0.0
        %715 = vmatprep.subr.mxu0 0.0
        %716 = vmatpush1.msra.mxu0 0.0
        %717 = vmatprep.subr.mxu0 0.0
        %718 = vmatpush1.msra.mxu0 0.0
        %719 = vmatprep.subr.mxu0 0.0
        %720 = vmatpush1.msra.mxu0 0.0
        %721 = vmatprep.subr.mxu0 0.0
        %722 = vmatpush1.msra.mxu0 0.0
        %723 = vmatprep.subr.mxu0 0.0
        %724 = vmatpush1.msra.mxu0 0.0
        %725 = vmatprep.subr.mxu0 0.0
        %726 = vmatpush1.msra.mxu0 0.0
        %727 = vmatprep.subr.mxu0 0.0
        %728 = vmatpush1.msra.mxu0 0.0
        %729 = vmatprep.subr.mxu0 0.0
        %730 = vmatpush1.msra.mxu0 %v425
        %731 = vmatprep.subr.mxu0 0.0
        %732 = vmatpush2.msra.mxu0 0.0
        %733 = vmatprep.subr.mxu0 0.0
        %734 = vmatpush2.msra.mxu0 0.0
        %735 = vmatprep.subr.mxu0 0.0
        %736 = vmatpush2.msra.mxu0 0.0
        %737 = vmatprep.subr.mxu0 0.0
        %738 = vmatpush2.msra.mxu0 0.0
        %739 = vmatprep.subr.mxu0 0.0
        %740 = vmatpush2.msra.mxu0 0.0
        %741 = vmatprep.subr.mxu0 0.0
        %742 = vmatpush2.msra.mxu0 0.0
        %743 = vmatprep.subr.mxu0 0.0
        %744 = vmatpush2.msra.mxu0 0.0
        %745 = vmatprep.subr.mxu0 0.0
        %746 = vmatpush2.msra.mxu0 0.0
        %747 = vmatprep.subr.mxu0 0.0
        %748 = vmatpush2.msra.mxu0 0.0
        %749 = vmatprep.subr.mxu0 0.0
        %750 = vmatpush2.msra.mxu0 0.0
        %751 = vmatprep.subr.mxu0 0.0
        %752 = vmatpush2.msra.mxu0 0.0
        %753 = vmatprep.subr.mxu0 0.0
        %754 = vmatpush2.msra.mxu0 0.0
        %755 = vmatprep.subr.mxu0 0.0
        %756 = vmatpush2.msra.mxu0 0.0
        %757 = vmatprep.subr.mxu0 0.0
        %758 = vmatpush2.msra.mxu0 0.0
        %759 = vmatprep.subr.mxu0 0.0
        %760 = vmatpush2.msra.mxu0 0.0
        %761 = vmatprep.subr.mxu0 0.0
        %762 = vmatpush2.msra.mxu0 0.0
        %763 = vmatprep.mubr.f32.mxu0 0.0
        %764 = vmatmul.mubr.f32.gmra.mxu0 %v697
        %v765 = vpop.f32.mrf.mxu0
        %v766 = vadd.f32 1.0, %v765
        %v767 = vpop.f32.mrf.mxu0
        %768 = vdwg.mxu0
        %v769 = vrcp.pop %v766
        %v770 = vmul.f32 1.0, %v769
        %v771 = vld [vmem:[#allocation4] sm:$0xff]
        %v772 = vld [vmem:[#allocation4 + $0x8] sm:$0xff]
        %v773 = vld [vmem:[#allocation4 + $0x10] sm:$0xff]
        %v774 = vld [vmem:[#allocation4 + $0x18] sm:$0xff]
        %v775 = vld [vmem:[#allocation4 + $0x20] sm:$0xff]
        %v776 = vld [vmem:[#allocation4 + $0x28] sm:$0xff]
        %v777 = vld [vmem:[#allocation4 + $0x30] sm:$0xff]
        %v778 = vld [vmem:[#allocation4 + $0x38] sm:$0xff]
        %vm779 = vcmask 523264
        %v781 = vsel %vm779, %v771, 0
        %v784 = vsel %vm779, %v772, 0
        %v787 = vsel %vm779, %v773, 0
        %v790 = vsel %vm779, %v774, 0
        %v793 = vsel %vm779, %v775, 0
        %v796 = vsel %vm779, %v776, 0
        %v799 = vsel %vm779, %v777, 0
        %v802 = vsel %vm779, %v778, 0
        %804 = vmatprep.subr.mxu0 0.0
        %805 = vmatpush1.msra.mxu0 0.0
        %806 = vmatprep.subr.mxu0 0.0
        %807 = vmatpush1.msra.mxu0 0.0
        %808 = vmatprep.subr.mxu0 0.0
        %809 = vmatpush1.msra.mxu0 0.0
        %810 = vmatprep.subr.mxu0 0.0
        %811 = vmatpush1.msra.mxu0 0.0
        %812 = vmatprep.subr.mxu0 0.0
        %813 = vmatpush1.msra.mxu0 0.0
        %814 = vmatprep.subr.mxu0 0.0
        %815 = vmatpush1.msra.mxu0 0.0
        %816 = vmatprep.subr.mxu0 0.0
        %817 = vmatpush1.msra.mxu0 0.0
        %818 = vmatprep.subr.mxu0 0.0
        %819 = vmatpush1.msra.mxu0 0.0
        %820 = vmatprep.subr.mxu0 0.0
        %821 = vmatpush1.msra.mxu0 %v531
        %822 = vmatprep.subr.mxu0 0.0
        %823 = vmatpush1.msra.mxu0 %v530
        %824 = vmatprep.subr.mxu0 0.0
        %825 = vmatpush1.msra.mxu0 %v529
        %826 = vmatprep.subr.mxu0 0.0
        %827 = vmatpush1.msra.mxu0 %v528
        %828 = vmatprep.subr.mxu0 0.0
        %829 = vmatpush1.msra.mxu0 %v527
        %830 = vmatprep.subr.mxu0 0.0
        %831 = vmatpush1.msra.mxu0 %v526
        %832 = vmatprep.subr.mxu0 0.0
        %833 = vmatpush1.msra.mxu0 %v525
        %834 = vmatprep.subr.mxu0 0.0
        %835 = vmatpush1.msra.mxu0 %v524
        %836 = vmatprep.subr.mxu0 0.0
        %837 = vmatpush2.msra.mxu0 0.0
        %838 = vmatprep.subr.mxu0 0.0
        %839 = vmatpush2.msra.mxu0 0.0
        %840 = vmatprep.subr.mxu0 0.0
        %841 = vmatpush2.msra.mxu0 0.0
        %842 = vmatprep.subr.mxu0 0.0
        %843 = vmatpush2.msra.mxu0 0.0
        %844 = vmatprep.subr.mxu0 0.0
        %845 = vmatpush2.msra.mxu0 0.0
        %846 = vmatprep.subr.mxu0 0.0
        %847 = vmatpush2.msra.mxu0 0.0
        %848 = vmatprep.subr.mxu0 0.0
        %849 = vmatpush2.msra.mxu0 0.0
        %850 = vmatprep.subr.mxu0 0.0
        %851 = vmatpush2.msra.mxu0 0.0
        %852 = vmatprep.subr.mxu0 0.0
        %853 = vmatpush2.msra.mxu0 0.0
        %854 = vmatprep.subr.mxu0 0.0
        %855 = vmatpush2.msra.mxu0 0.0
        %856 = vmatprep.subr.mxu0 0.0
        %857 = vmatpush2.msra.mxu0 0.0
        %858 = vmatprep.subr.mxu0 0.0
        %859 = vmatpush2.msra.mxu0 0.0
        %860 = vmatprep.subr.mxu0 0.0
        %861 = vmatpush2.msra.mxu0 0.0
        %862 = vmatprep.subr.mxu0 0.0
        %863 = vmatpush2.msra.mxu0 0.0
        %864 = vmatprep.subr.mxu0 0.0
        %865 = vmatpush2.msra.mxu0 0.0
        %866 = vmatprep.subr.mxu0 0.0
        %867 = vmatpush2.msra.mxu0 0.0
        %868 = vmatprep.mubr.f32.mxu0 0.0
        %869 = vmatmul.mubr.f32.gmra.mxu0 %v781
        %v870 = vpop.f32.mrf.mxu0
        %v871 = vadd.f32 0.0, %v870
        %v872 = vpop.f32.mrf.mxu0
        %873 = vmatprep.mubr.f32.mxu0 0.0
        %874 = vmatmul.mubr.f32.gmra.mxu0 %v784
        %v875 = vpop.f32.mrf.mxu0
        %v876 = vadd.f32 0.0, %v875
        %v877 = vpop.f32.mrf.mxu0
        %878 = vmatprep.mubr.f32.mxu0 0.0
        %879 = vmatmul.mubr.f32.gmra.mxu0 %v787
        %v880 = vpop.f32.mrf.mxu0
        %v881 = vadd.f32 0.0, %v880
        %v882 = vpop.f32.mrf.mxu0
        %883 = vmatprep.mubr.f32.mxu0 0.0
        %884 = vmatmul.mubr.f32.gmra.mxu0 %v790
        %v885 = vpop.f32.mrf.mxu0
        %v886 = vadd.f32 0.0, %v885
        %v887 = vpop.f32.mrf.mxu0
        %888 = vmatprep.mubr.f32.mxu0 0.0
        %889 = vmatmul.mubr.f32.gmra.mxu0 %v793
        %v890 = vpop.f32.mrf.mxu0
        %v891 = vadd.f32 0.0, %v890
        %v892 = vpop.f32.mrf.mxu0
        %893 = vmatprep.mubr.f32.mxu0 0.0
        %894 = vmatmul.mubr.f32.gmra.mxu0 %v796
        %v895 = vpop.f32.mrf.mxu0
        %v896 = vadd.f32 0.0, %v895
        %v897 = vpop.f32.mrf.mxu0
        %898 = vmatprep.mubr.f32.mxu0 0.0
        %899 = vmatmul.mubr.f32.gmra.mxu0 %v799
        %v900 = vpop.f32.mrf.mxu0
        %v901 = vadd.f32 0.0, %v900
        %v902 = vpop.f32.mrf.mxu0
        %903 = vmatprep.mubr.f32.mxu0 0.0
        %904 = vmatmul.mubr.f32.gmra.mxu0 %v802
        %v905 = vpop.f32.mrf.mxu0
        %v906 = vadd.f32 0.0, %v905
        %v907 = vpop.f32.mrf.mxu0
        %908 = vdwg.mxu0
        %v911 = vunpack.c.l.s4 1966171168
        %v912 = vunpack.c.0.s8 %v911
        %v913 = vlaneseq
        %v914 = vshrl.u32 %v913, 7
        %v915 = vsub.s32 %v912, %v914
        %v916 = vrot.slane %v770, %v915
        %v917 = vcombine.high %v916, %v916
        %v919 = vunpack.c.l.s4 1966171168
        %v920 = vunpack.c.0.s8 %v919
        %v921 = vlaneseq
        %v922 = vshrl.u32 %v921, 7
        %v923 = vsub.s32 %v920, %v922
        %v924 = vrot.slane %v916, %v923
        %v926 = vunpack.c.l.s4 1966171168
        %v927 = vunpack.c.0.s8 %v926
        %v928 = vlaneseq
        %v929 = vshrl.u32 %v928, 7
        %v930 = vsub.s32 %v927, %v929
        %v931 = vrot.slane %v917, %v930
        %v932 = vcombine.high %v924, %v924
        %v933 = vcombine.high %v931, %v931
        %v934 = vlaneseq
        %v935 = vshrl.u32 %v934, 7
        %v936 = vsub.s32 0, %v935
        %v937 = vrot.slane %v924, %v936
        %v938 = vlaneseq
        %v939 = vshrl.u32 %v938, 7
        %v940 = vsub.s32 0, %v939
        %v941 = vrot.slane %v931, %v940
        %v942 = vlaneseq
        %v943 = vshrl.u32 %v942, 7
        %v944 = vsub.s32 0, %v943
        %v945 = vrot.slane %v932, %v944
        %v946 = vlaneseq
        %v947 = vshrl.u32 %v946, 7
        %v948 = vsub.s32 0, %v947
        %v949 = vrot.slane %v933, %v948
        %v954 = vmul.f32 %v871, %v937
        %v955 = vmul.f32 %v876, %v937
        %v956 = vmul.f32 %v881, %v941
        %v957 = vmul.f32 %v886, %v941
        %v958 = vmul.f32 %v891, %v945
        %v959 = vmul.f32 %v896, %v945
        %v960 = vmul.f32 %v901, %v949
        %v961 = vmul.f32 %v906, %v949
        %v962 = vadd.f32 %v686, %v954
        %v963 = vadd.f32 %v687, %v955
        %v964 = vadd.f32 %v688, %v956
        %v965 = vadd.f32 %v689, %v957
        %v966 = vadd.f32 %v690, %v958
        %v967 = vadd.f32 %v691, %v959
        %v968 = vadd.f32 %v692, %v960
        %v969 = vadd.f32 %v693, %v961
        %s970 = scalar_lea.vmem %s408, 4
        %v971 = vld [vmem:[%s970] sm:$0xf]
        %v973 = vsel %vm695, %v971, 0
        %975 = vmatprep.subr.mxu0 0.0
        %976 = vmatpush1.msra.mxu0 0.0
        %977 = vmatprep.subr.mxu0 0.0
        %978 = vmatpush1.msra.mxu0 0.0
        %979 = vmatprep.subr.mxu0 0.0
        %980 = vmatpush1.msra.mxu0 0.0
        %981 = vmatprep.subr.mxu0 0.0
        %982 = vmatpush1.msra.mxu0 0.0
        %983 = vmatprep.subr.mxu0 0.0
        %984 = vmatpush1.msra.mxu0 0.0
        %985 = vmatprep.subr.mxu0 0.0
        %986 = vmatpush1.msra.mxu0 0.0
        %987 = vmatprep.subr.mxu0 0.0
        %988 = vmatpush1.msra.mxu0 0.0
        %989 = vmatprep.subr.mxu0 0.0
        %990 = vmatpush1.msra.mxu0 0.0
        %991 = vmatprep.subr.mxu0 0.0
        %992 = vmatpush1.msra.mxu0 0.0
        %993 = vmatprep.subr.mxu0 0.0
        %994 = vmatpush1.msra.mxu0 0.0
        %995 = vmatprep.subr.mxu0 0.0
        %996 = vmatpush1.msra.mxu0 0.0
        %997 = vmatprep.subr.mxu0 0.0
        %998 = vmatpush1.msra.mxu0 0.0
        %999 = vmatprep.subr.mxu0 0.0
        %1000 = vmatpush1.msra.mxu0 0.0
        %1001 = vmatprep.subr.mxu0 0.0
        %1002 = vmatpush1.msra.mxu0 0.0
        %1003 = vmatprep.subr.mxu0 0.0
        %1004 = vmatpush1.msra.mxu0 0.0
        %1005 = vmatprep.subr.mxu0 0.0
        %1006 = vmatpush1.msra.mxu0 %v425
        %1007 = vmatprep.subr.mxu0 0.0
        %1008 = vmatpush2.msra.mxu0 0.0
        %1009 = vmatprep.subr.mxu0 0.0
        %1010 = vmatpush2.msra.mxu0 0.0
        %1011 = vmatprep.subr.mxu0 0.0
        %1012 = vmatpush2.msra.mxu0 0.0
        %1013 = vmatprep.subr.mxu0 0.0
        %1014 = vmatpush2.msra.mxu0 0.0
        %1015 = vmatprep.subr.mxu0 0.0
        %1016 = vmatpush2.msra.mxu0 0.0
        %1017 = vmatprep.subr.mxu0 0.0
        %1018 = vmatpush2.msra.mxu0 0.0
        %1019 = vmatprep.subr.mxu0 0.0
        %1020 = vmatpush2.msra.mxu0 0.0
        %1021 = vmatprep.subr.mxu0 0.0
        %1022 = vmatpush2.msra.mxu0 0.0
        %1023 = vmatprep.subr.mxu0 0.0
        %1024 = vmatpush2.msra.mxu0 0.0
        %1025 = vmatprep.subr.mxu0 0.0
        %1026 = vmatpush2.msra.mxu0 0.0
        %1027 = vmatprep.subr.mxu0 0.0
        %1028 = vmatpush2.msra.mxu0 0.0
        %1029 = vmatprep.subr.mxu0 0.0
        %1030 = vmatpush2.msra.mxu0 0.0
        %1031 = vmatprep.subr.mxu0 0.0
        %1032 = vmatpush2.msra.mxu0 0.0
        %1033 = vmatprep.subr.mxu0 0.0
        %1034 = vmatpush2.msra.mxu0 0.0
        %1035 = vmatprep.subr.mxu0 0.0
        %1036 = vmatpush2.msra.mxu0 0.0
        %1037 = vmatprep.subr.mxu0 0.0
        %1038 = vmatpush2.msra.mxu0 0.0
        %1039 = vmatprep.mubr.f32.mxu0 0.0
        %1040 = vmatmul.mubr.f32.gmra.mxu0 %v973
        %v1041 = vpop.f32.mrf.mxu0
        %v1042 = vadd.f32 1.0, %v1041
        %v1043 = vpop.f32.mrf.mxu0
        %1044 = vdwg.mxu0
        %v1045 = vrcp.pop %v1042
        %v1046 = vmul.f32 1.0, %v1045
        %s1047 = scalar_lea.vmem [#allocation4], 64
        %v1048 = vld [vmem:[%s1047] sm:$0xff]
        %v1049 = vld [vmem:[%s1047 + $0x8] sm:$0xff]
        %v1050 = vld [vmem:[%s1047 + $0x10] sm:$0xff]
        %v1051 = vld [vmem:[%s1047 + $0x18] sm:$0xff]
        %v1052 = vld [vmem:[%s1047 + $0x20] sm:$0xff]
        %v1053 = vld [vmem:[%s1047 + $0x28] sm:$0xff]
        %v1054 = vld [vmem:[%s1047 + $0x30] sm:$0xff]
        %v1055 = vld [vmem:[%s1047 + $0x38] sm:$0xff]
        %v1057 = vsel %vm779, %v1048, 0
        %v1060 = vsel %vm779, %v1049, 0
        %v1063 = vsel %vm779, %v1050, 0
        %v1066 = vsel %vm779, %v1051, 0
        %v1069 = vsel %vm779, %v1052, 0
        %v1072 = vsel %vm779, %v1053, 0
        %v1075 = vsel %vm779, %v1054, 0
        %v1078 = vsel %vm779, %v1055, 0
        %1080 = vmatprep.subr.mxu0 0.0
        %1081 = vmatpush1.msra.mxu0 0.0
        %1082 = vmatprep.subr.mxu0 0.0
        %1083 = vmatpush1.msra.mxu0 0.0
        %1084 = vmatprep.subr.mxu0 0.0
        %1085 = vmatpush1.msra.mxu0 0.0
        %1086 = vmatprep.subr.mxu0 0.0
        %1087 = vmatpush1.msra.mxu0 0.0
        %1088 = vmatprep.subr.mxu0 0.0
        %1089 = vmatpush1.msra.mxu0 0.0
        %1090 = vmatprep.subr.mxu0 0.0
        %1091 = vmatpush1.msra.mxu0 0.0
        %1092 = vmatprep.subr.mxu0 0.0
        %1093 = vmatpush1.msra.mxu0 0.0
        %1094 = vmatprep.subr.mxu0 0.0
        %1095 = vmatpush1.msra.mxu0 0.0
        %1096 = vmatprep.subr.mxu0 0.0
        %1097 = vmatpush1.msra.mxu0 %v531
        %1098 = vmatprep.subr.mxu0 0.0
        %1099 = vmatpush1.msra.mxu0 %v530
        %1100 = vmatprep.subr.mxu0 0.0
        %1101 = vmatpush1.msra.mxu0 %v529
        %1102 = vmatprep.subr.mxu0 0.0
        %1103 = vmatpush1.msra.mxu0 %v528
        %1104 = vmatprep.subr.mxu0 0.0
        %1105 = vmatpush1.msra.mxu0 %v527
        %1106 = vmatprep.subr.mxu0 0.0
        %1107 = vmatpush1.msra.mxu0 %v526
        %1108 = vmatprep.subr.mxu0 0.0
        %1109 = vmatpush1.msra.mxu0 %v525
        %1110 = vmatprep.subr.mxu0 0.0
        %1111 = vmatpush1.msra.mxu0 %v524
        %1112 = vmatprep.subr.mxu0 0.0
        %1113 = vmatpush2.msra.mxu0 0.0
        %1114 = vmatprep.subr.mxu0 0.0
        %1115 = vmatpush2.msra.mxu0 0.0
        %1116 = vmatprep.subr.mxu0 0.0
        %1117 = vmatpush2.msra.mxu0 0.0
        %1118 = vmatprep.subr.mxu0 0.0
        %1119 = vmatpush2.msra.mxu0 0.0
        %1120 = vmatprep.subr.mxu0 0.0
        %1121 = vmatpush2.msra.mxu0 0.0
        %1122 = vmatprep.subr.mxu0 0.0
        %1123 = vmatpush2.msra.mxu0 0.0
        %1124 = vmatprep.subr.mxu0 0.0
        %1125 = vmatpush2.msra.mxu0 0.0
        %1126 = vmatprep.subr.mxu0 0.0
        %1127 = vmatpush2.msra.mxu0 0.0
        %1128 = vmatprep.subr.mxu0 0.0
        %1129 = vmatpush2.msra.mxu0 0.0
        %1130 = vmatprep.subr.mxu0 0.0
        %1131 = vmatpush2.msra.mxu0 0.0
        %1132 = vmatprep.subr.mxu0 0.0
        %1133 = vmatpush2.msra.mxu0 0.0
        %1134 = vmatprep.subr.mxu0 0.0
        %1135 = vmatpush2.msra.mxu0 0.0
        %1136 = vmatprep.subr.mxu0 0.0
        %1137 = vmatpush2.msra.mxu0 0.0
        %1138 = vmatprep.subr.mxu0 0.0
        %1139 = vmatpush2.msra.mxu0 0.0
        %1140 = vmatprep.subr.mxu0 0.0
        %1141 = vmatpush2.msra.mxu0 0.0
        %1142 = vmatprep.subr.mxu0 0.0
        %1143 = vmatpush2.msra.mxu0 0.0
        %1144 = vmatprep.mubr.f32.mxu0 0.0
        %1145 = vmatmul.mubr.f32.gmra.mxu0 %v1057
        %v1146 = vpop.f32.mrf.mxu0
        %v1147 = vadd.f32 0.0, %v1146
        %v1148 = vpop.f32.mrf.mxu0
        %1149 = vmatprep.mubr.f32.mxu0 0.0
        %1150 = vmatmul.mubr.f32.gmra.mxu0 %v1060
        %v1151 = vpop.f32.mrf.mxu0
        %v1152 = vadd.f32 0.0, %v1151
        %v1153 = vpop.f32.mrf.mxu0
        %1154 = vmatprep.mubr.f32.mxu0 0.0
        %1155 = vmatmul.mubr.f32.gmra.mxu0 %v1063
        %v1156 = vpop.f32.mrf.mxu0
        %v1157 = vadd.f32 0.0, %v1156
        %v1158 = vpop.f32.mrf.mxu0
        %1159 = vmatprep.mubr.f32.mxu0 0.0
        %1160 = vmatmul.mubr.f32.gmra.mxu0 %v1066
        %v1161 = vpop.f32.mrf.mxu0
        %v1162 = vadd.f32 0.0, %v1161
        %v1163 = vpop.f32.mrf.mxu0
        %1164 = vmatprep.mubr.f32.mxu0 0.0
        %1165 = vmatmul.mubr.f32.gmra.mxu0 %v1069
        %v1166 = vpop.f32.mrf.mxu0
        %v1167 = vadd.f32 0.0, %v1166
        %v1168 = vpop.f32.mrf.mxu0
        %1169 = vmatprep.mubr.f32.mxu0 0.0
        %1170 = vmatmul.mubr.f32.gmra.mxu0 %v1072
        %v1171 = vpop.f32.mrf.mxu0
        %v1172 = vadd.f32 0.0, %v1171
        %v1173 = vpop.f32.mrf.mxu0
        %1174 = vmatprep.mubr.f32.mxu0 0.0
        %1175 = vmatmul.mubr.f32.gmra.mxu0 %v1075
        %v1176 = vpop.f32.mrf.mxu0
        %v1177 = vadd.f32 0.0, %v1176
        %v1178 = vpop.f32.mrf.mxu0
        %1179 = vmatprep.mubr.f32.mxu0 0.0
        %1180 = vmatmul.mubr.f32.gmra.mxu0 %v1078
        %v1181 = vpop.f32.mrf.mxu0
        %v1182 = vadd.f32 0.0, %v1181
        %v1183 = vpop.f32.mrf.mxu0
        %1184 = vdwg.mxu0
        %v1187 = vunpack.c.l.s4 1966171168
        %v1188 = vunpack.c.0.s8 %v1187
        %v1189 = vlaneseq
        %v1190 = vshrl.u32 %v1189, 7
        %v1191 = vsub.s32 %v1188, %v1190
        %v1192 = vrot.slane %v1046, %v1191
        %v1193 = vcombine.high %v1192, %v1192
        %v1195 = vunpack.c.l.s4 1966171168
        %v1196 = vunpack.c.0.s8 %v1195
        %v1197 = vlaneseq
        %v1198 = vshrl.u32 %v1197, 7
        %v1199 = vsub.s32 %v1196, %v1198
        %v1200 = vrot.slane %v1192, %v1199
        %v1202 = vunpack.c.l.s4 1966171168
        %v1203 = vunpack.c.0.s8 %v1202
        %v1204 = vlaneseq
        %v1205 = vshrl.u32 %v1204, 7
        %v1206 = vsub.s32 %v1203, %v1205
        %v1207 = vrot.slane %v1193, %v1206
        %v1208 = vcombine.high %v1200, %v1200
        %v1209 = vcombine.high %v1207, %v1207
        %v1210 = vlaneseq
        %v1211 = vshrl.u32 %v1210, 7
        %v1212 = vsub.s32 0, %v1211
        %v1213 = vrot.slane %v1200, %v1212
        %v1214 = vlaneseq
        %v1215 = vshrl.u32 %v1214, 7
        %v1216 = vsub.s32 0, %v1215
        %v1217 = vrot.slane %v1207, %v1216
        %v1218 = vlaneseq
        %v1219 = vshrl.u32 %v1218, 7
        %v1220 = vsub.s32 0, %v1219
        %v1221 = vrot.slane %v1208, %v1220
        %v1222 = vlaneseq
        %v1223 = vshrl.u32 %v1222, 7
        %v1224 = vsub.s32 0, %v1223
        %v1225 = vrot.slane %v1209, %v1224
        %v1230 = vmul.f32 %v1147, %v1213
        %v1231 = vmul.f32 %v1152, %v1213
        %v1232 = vmul.f32 %v1157, %v1217
        %v1233 = vmul.f32 %v1162, %v1217
        %v1234 = vmul.f32 %v1167, %v1221
        %v1235 = vmul.f32 %v1172, %v1221
        %v1236 = vmul.f32 %v1177, %v1225
        %v1237 = vmul.f32 %v1182, %v1225
        %v1238 = vadd.f32 %v962, %v1230
        %v1239 = vadd.f32 %v963, %v1231
        %v1240 = vadd.f32 %v964, %v1232
        %v1241 = vadd.f32 %v965, %v1233
        %v1242 = vadd.f32 %v966, %v1234
        %v1243 = vadd.f32 %v967, %v1235
        %v1244 = vadd.f32 %v968, %v1236
        %v1245 = vadd.f32 %v969, %v1237
        %v1246 = vmax.f32 %v1238, 0.0
        %v1247 = vmax.f32 %v1239, 0.0
        %v1248 = vmax.f32 %v1240, 0.0
        %v1249 = vmax.f32 %v1241, 0.0
        %v1250 = vmax.f32 %v1242, 0.0
        %v1251 = vmax.f32 %v1243, 0.0
        %v1252 = vmax.f32 %v1244, 0.0
        %v1253 = vmax.f32 %v1245, 0.0
        %1254 = vst.msk [vmem:[%s423] sm:$0xff] %vm695, %v1246
        %1255 = vst.msk [vmem:[%s423 + $0x8] sm:$0xff] %vm695, %v1247
        %1256 = vst.msk [vmem:[%s423 + $0x10] sm:$0xff] %vm695, %v1248
        %1257 = vst.msk [vmem:[%s423 + $0x18] sm:$0xff] %vm695, %v1249
        %1258 = vst.msk [vmem:[%s423 + $0x20] sm:$0xff] %vm695, %v1250
        %1259 = vst.msk [vmem:[%s423 + $0x28] sm:$0xff] %vm695, %v1251
        %1260 = vst.msk [vmem:[%s423 + $0x30] sm:$0xff] %vm695, %v1252
        %1261 = vst.msk [vmem:[%s423 + $0x38] sm:$0xff] %vm695, %v1253
        %p1262 = scmp.lt.s32.totalorder %s26, 1
        %s1263 = scalar_select %p1262, %s26, 1
        %p1264 = scmp.lt.s32.totalorder %s27, 0
        %s1265 = scalar_select %p1264, %s27, 0
        %s1266 = smul.addr %s1263, 8
        %s1267 = sadd.s32 %s1265, %s1266
        %s1268 = smul.addr %s1267, 8
        %s1269 = scalar_lea.vmem %s7, %s1268
        // Predicated region
        $region57: #{tpu_custom_call.1} parent=47 // pred_check
          %p1270 = pneg %p232
        $region58: #{tpu_custom_call.1} parent=47 // pred_check_branch
          %1272 = sbr.rel (%p1270) target = $region60
        $region59: #{tpu_custom_call.1} parent=47 // pred_region
          _
        $region60: #{tpu_custom_call.1} parent=47 // pred_fallthru
          _
      $region48: #{tpu_custom_call.1} parent=5 // pred_fallthru
        _
      %p1273 = scmp.le.s32.totalorder 2, %s17
      // Predicated region
      $region61: #{tpu_custom_call.1} parent=5 // pred_check
        %p1274 = pneg %p1273
      $region62: #{tpu_custom_call.1} parent=5 // pred_check_branch
        %1276 = sbr.rel (%p1274) target = $region64
      $region63: #{tpu_custom_call.1} parent=5 // pred_region
        %s1277 = ssub.s32 %s17, 2
        // Predicated region
        $region65: #{tpu_custom_call.1} parent=63 // pred_check
          %p1278 = pneg %p238
        $region66: #{tpu_custom_call.1} parent=63 // pred_check_branch
          %1280 = sbr.rel (%p1278) target = $region68
        $region67: #{tpu_custom_call.1} parent=63 // pred_region
          %p1281 = scmp.lt.s32.totalorder %s28, 1
          %s1282 = scalar_select %p1281, %s28, 1
          %p1283 = scmp.lt.s32.totalorder %s29, 0
          %s1284 = scalar_select %p1283, %s29, 0
          %s1285 = smul.addr %s1282, 8
          %s1286 = sadd.s32 %s1284, %s1285
          %s1287 = smul.addr %s1286, 8
          %s1288 = scalar_lea.vmem %s7, %s1287
        $region68: #{tpu_custom_call.1} parent=63 // pred_fallthru
          _
      $region64: #{tpu_custom_call.1} parent=5 // pred_fallthru
        _
    $region6: #{tpu_custom_call.1} parent=1 // loop_footer
      %s21 = sadd.s32 1, %s17
    $region7: #{tpu_custom_call.1} parent=1 // loop_footer_branch
      %16 = sbr.rel target = $region3
    $region8: #{tpu_custom_call.1} parent=1 // loop_exit
      _
    %1289 = vsyncpa [#allocation3], 1
    %s1290 = scalar_lea.sflag [#allocation3], 1
    %1291 = vsyncpa %s1290, 1
    %1292 = vsyncpa [#allocation5], 1

</llo_original>
